<compile_context>
chip_gen: v7x
topology: tpu7x:2x2x1
jax: 0.10.0
libtpu: 0.0.40
codegen_flags: <defaults>
</compile_context>

<pallas_src>
import functools

import jax
import jax.numpy as jnp
from jax.experimental import pallas as pl
from jax.experimental.pallas import tpu as pltpu


# ---------------------------------------------------------------------------
# Kernels
# ---------------------------------------------------------------------------

def _mydnn_kernel_fused(x_ref, w1_ref, b1_ref, w2_ref, b2_ref, o_ref,
                        *, inv_seq_len):
    """Whole seq dim resident in the block: one batch tile per grid step."""
    # Mean-pool over seq; accumulate in f32 even if x is streamed as bf16.
    pooled = jnp.sum(x_ref[...].astype(jnp.float32), axis=1) * inv_seq_len
    # fc1 + ReLU on the MXU (f32 accumulation).
    h = jnp.dot(pooled.astype(w1_ref.dtype), w1_ref[...],
                preferred_element_type=jnp.float32)
    h = jnp.maximum(h + b1_ref[...], 0.0)
    # fc2 (out_features == 1): VPU multiply + lane reduction (no N=1 MXU pass),
    # b2 is an SMEM scalar, then sigmoid.
    y = jnp.sum(h * w2_ref[...], axis=-1, keepdims=True) + b2_ref[0]
    o_ref[...] = jax.nn.sigmoid(y)


def _mydnn_kernel_accum(x_ref, w1_ref, b1_ref, w2_ref, b2_ref, o_ref,
                        pooled_acc, *, inv_seq_len):
    """Fallback for very large S: seq axis tiled, pooled sum accumulated."""
    s = pl.program_id(1)

    @pl.when(s == 0)
    def _init():
        pooled_acc[...] = jnp.zeros_like(pooled_acc)

    pooled_acc[...] += jnp.sum(x_ref[...].astype(jnp.float32), axis=1)

    @pl.when(s == pl.num_programs(1) - 1)
    def _finalize():
        pooled = pooled_acc[...] * inv_seq_len
        h = jnp.dot(pooled.astype(w1_ref.dtype), w1_ref[...],
                    preferred_element_type=jnp.float32)
        h = jnp.maximum(h + b1_ref[...], 0.0)
        y = jnp.sum(h * w2_ref[...], axis=-1, keepdims=True) + b2_ref[0]
        o_ref[...] = jax.nn.sigmoid(y)


# ---------------------------------------------------------------------------
# Tile / VMEM budgeting
# ---------------------------------------------------------------------------

def _round_up(x, m):
    return (x + m - 1) // m * m


def _vmem_capacity_bytes():
    """Physical per-core VMEM (generation-aware); conservative fallback."""
    try:
        info = pltpu.get_tpu_info()
        cap = getattr(info, "vmem_capacity_bytes", None)
        if cap:
            return int(cap)
    except Exception:
        pass
    return 64 * 1024 * 1024  # conservative: v7x per-TensorCore VMEM


def _overhead_bytes(tb, D, H, w_itemsize, seq_tiled):
    """Everything in VMEM besides the streamed x block."""
    w1 = 2 * D * H * w_itemsize                         # w1, double-buffered
    rows = 2 * 2 * 8 * _round_up(H, 128) * 4            # b1 + w2 rows (padded)
    out = 2 * _round_up(tb, 8) * 128 * 4                # (tb,1) output (padded)
    scratch = _round_up(tb, 8) * _round_up(D, 128) * 4 if seq_tiled else 0
    slack = 1 << 20                                     # Mosaic internal scratch
    return w1 + rows + out + scratch + slack


def _tile_candidates(n):
    """Valid block sizes for a second-minor dim: 8-multiples dividing n, plus n."""
    cands = {t for t in range(8, n + 1, 8) if n % t == 0}
    cands.add(n)
    return sorted(cands)


def _select_tiles(B, S, D, H, x_itemsize, w_itemsize, budget):
    tb_cands = _tile_candidates(B)
    # Keep >= 2 batch blocks when possible so the "parallel" batch axis shards
    # across v7x's two TensorCores (measured no-op on single-TC v5e/v6e).
    two_core = [t for t in tb_cands if t <= B // 2]
    if two_core:
        tb_cands = two_core

    def fits(tb, ts, seq_tiled):
        return (2 * tb * ts * D * x_itemsize
                + _overhead_bytes(tb, D, H, w_itemsize, seq_tiled)) <= budget

    # Preferred: collapse the seq grid (ts = S) -> one large DMA per batch
    # block, no accumulator scratch, fewest ~0.35 us grid steps.
    best = None
    for tb in reversed(tb_cands):
        if fits(tb, S, seq_tiled=False):
            best = tb
            break
    if best is not None:
        # Minor: prefer an MXU-row-aligned (x128) batch tile if one of similar
        # size also fits (free systolic-array utilization).
        if best % 128 != 0:
            aligned = [t for t in tb_cands
                       if t % 128 == 0 and t >= max(8, best // 2)]
            for tb in reversed(aligned):
                if fits(tb, S, seq_tiled=False):
                    best = tb
                    break
        return best, S

    # Fallback (very large S): tile the seq axis with the biggest tile fitting.
    tb = tb_cands[0]
    ts_cands = _tile_candidates(S)
    for ts in reversed(ts_cands):
        if fits(tb, ts, seq_tiled=True):
            return tb, ts
    return tb, ts_cands[0]


# ---------------------------------------------------------------------------
# Wrapper
# ---------------------------------------------------------------------------

def mydnn_forward(x, w1, b1, w2, b2, *, tb=None, ts=None, use_bf16=False):
    """MyDNN forward pass.  x: (B, S, D) float32 -> (B, 1) float32."""
    B, S, D = x.shape
    H = w1.shape[1]
    assert w1.shape == (D, H)
    assert w2.reshape(-1).shape == (H,)
    assert b2.size == 1

    x_dtype = jnp.bfloat16 if use_bf16 else jnp.float32
    w_dtype = jnp.bfloat16 if use_bf16 else jnp.float32
    x_itemsize = jnp.dtype(x_dtype).itemsize
    w_itemsize = jnp.dtype(w_dtype).itemsize

    # Generation-aware budget: ~48 MiB usable on v7x (64 MiB physical),
    # ~96 MiB on v5e/v6e (128 MiB physical).
    budget = (3 * _vmem_capacity_bytes()) // 4
    if tb is None or ts is None:
        auto_tb, auto_ts = _select_tiles(B, S, D, H, x_itemsize, w_itemsize,
                                         budget)
        tb = auto_tb if tb is None else tb
        ts = auto_ts if ts is None else ts
    assert B % tb == 0 and (tb % 8 == 0 or tb == B)
    assert S % ts == 0 and (ts % 8 == 0 or ts == S)

    seq_tiled = ts != S
    inv_seq_len = 1.0 / S

    x_in = x.astype(x_dtype)
    w1_in = w1.astype(w_dtype)
    b1_2d = b1.reshape(1, H).astype(jnp.float32)
    w2_row = w2.reshape(1, H).astype(jnp.float32)  # (H,1) -> (1,H) row layout
    b2_1d = b2.reshape(1).astype(jnp.float32)

    # vmem_limit derived from the actual footprint (+slack), capped at budget.
    footprint = (2 * tb * ts * D * x_itemsize
                 + _overhead_bytes(tb, D, H, w_itemsize, seq_tiled))
    vmem_limit = int(max(min(footprint + (4 << 20), budget), 16 << 20))

    cost = pl.CostEstimate(
        flops=2 * B * D * H + 2 * B * H,
        transcendentals=B,  # sigmoid
        bytes_accessed=(B * S * D * x_itemsize + D * H * w_itemsize
                        + (2 * H + 1) * 4 + B * 4),
    )

    nb = B // tb
    if not seq_tiled:
        grid = (nb,)
        kernel = functools.partial(_mydnn_kernel_fused, inv_seq_len=inv_seq_len)
        in_specs = [
            # streamed x tile (double-buffered by the pipeline), full seq + D
            pl.BlockSpec((tb, S, D), lambda i: (i, 0, 0)),
            # resident weights/biases
            pl.BlockSpec((D, H), lambda i: (0, 0)),
            pl.BlockSpec((1, H), lambda i: (0, 0)),
            pl.BlockSpec((1, H), lambda i: (0, 0)),
            # b2 scalar in SMEM (no padded VMEM tile / DMA)
            pl.BlockSpec(memory_space=pltpu.MemorySpace.SMEM),
        ]
        out_specs = pl.BlockSpec((tb, 1), lambda i: (i, 0))
        scratch_shapes = []
        dim_sem = ("parallel",)
    else:
        grid = (nb, S // ts)
        kernel = functools.partial(_mydnn_kernel_accum, inv_seq_len=inv_seq_len)
        in_specs = [
            pl.BlockSpec((tb, ts, D), lambda i, s: (i, s, 0)),
            pl.BlockSpec((D, H), lambda i, s: (0, 0)),
            pl.BlockSpec((1, H), lambda i, s: (0, 0)),
            pl.BlockSpec((1, H), lambda i, s: (0, 0)),
            pl.BlockSpec(memory_space=pltpu.MemorySpace.SMEM),
        ]
        # output block constant along the seq axis -> resident accumulator
        out_specs = pl.BlockSpec((tb, 1), lambda i, s: (i, 0))
        scratch_shapes = [pltpu.VMEM((tb, D), jnp.float32)]
        dim_sem = ("parallel", "arbitrary")

    return pl.pallas_call(
        kernel,
        out_shape=jax.ShapeDtypeStruct((B, 1), jnp.float32),
        grid_spec=pltpu.PrefetchScalarGridSpec(
            num_scalar_prefetch=0,
            grid=grid,
            in_specs=in_specs,
            out_specs=out_specs,
            scratch_shapes=scratch_shapes,
        ),
        compiler_params=pltpu.CompilerParams(
            dimension_semantics=dim_sem,
            vmem_limit_bytes=vmem_limit,
        ),
        cost_estimate=cost,
    )(x_in, w1_in, b1_2d, w2_row, b2_1d)


def reference_forward(x, w1, b1, w2, b2):
    pooled = jnp.mean(x, axis=1)
    h = jnp.maximum(pooled @ w1 + b1, 0.0)
    y = h @ w2 + b2
    return jax.nn.sigmoid(y).reshape(-1, 1)


if __name__ == "__main__":
    # Small shapes consistent with the module: (batch, seq_len, hidden_dim)
    # from vectorize_data's last_hidden_state; fc1 width 256.
    B, S, D, H = 8, 16, 128, 256

    key = jax.random.PRNGKey(0)
    kx, kw1, kb1, kw2, kb2 = jax.random.split(key, 5)

    x = jax.random.normal(kx, (B, S, D), dtype=jnp.float32)
    # Deterministic synthetic parameters (mimics nn.Linear uniform init scale).
    lim1 = 1.0 / jnp.sqrt(D)
    lim2 = 1.0 / jnp.sqrt(H)
    w1 = jax.random.uniform(kw1, (D, H), minval=-lim1, maxval=lim1, dtype=jnp.float32)
    b1 = jax.random.uniform(kb1, (H,), minval=-lim1, maxval=lim1, dtype=jnp.float32)
    w2 = jax.random.uniform(kw2, (H, 1), minval=-lim2, maxval=lim2, dtype=jnp.float32)
    b2 = jax.random.uniform(kb2, (1,), minval=-lim2, maxval=lim2, dtype=jnp.float32)

    ref = reference_forward(x, w1, b1, w2, b2)

    # 1) Auto tiling: seq grid collapses (ts = S) -> fused single-pass kernel.
    out_fused = jax.block_until_ready(mydnn_forward(x, w1, b1, w2, b2))
    assert out_fused.shape == (B, 1), out_fused.shape
    assert jnp.allclose(out_fused, ref, atol=1e-5, rtol=1e-5), "fused mismatch"

    # 2) Forced seq tiling: exercises the accumulator (pl.when) fallback path.
    out_acc = jax.block_until_ready(mydnn_forward(x, w1, b1, w2, b2, tb=8, ts=8))
    assert jnp.allclose(out_acc, ref, atol=1e-5, rtol=1e-5), "accum mismatch"

    # 3) Optional bf16 fast path (halves HBM traffic on the dominant x read).
    out_bf16 = jax.block_until_ready(mydnn_forward(x, w1, b1, w2, b2, use_bf16=True))
    assert jnp.allclose(out_bf16, ref, atol=2e-2, rtol=2e-2), "bf16 mismatch"

    print("KERNEL_OK")
</pallas_src>

<mosaic_0001>
module attributes {stable_mosaic.version = 11 : i64} {
  func.func @_mydnn_kernel_fused(%arg0: i32, %arg1: memref<8x16x128xf32, #tpu.memory_space<vmem>>, %arg2: memref<128x256xf32, #tpu.memory_space<vmem>>, %arg3: memref<1x256xf32, #tpu.memory_space<vmem>>, %arg4: memref<1x256xf32, #tpu.memory_space<vmem>>, %arg5: memref<1xf32, #tpu.memory_space<smem>>, %arg6: memref<8x1xf32, #tpu.memory_space<vmem>>) attributes {dimension_semantics = [#tpu.dimension_semantics<parallel>], iteration_bounds = array<i64: 1>, scalar_prefetch = 0 : i64, scratch_operands = 0 : i64, tpu.core_type = #tpu.core_type<tc>, window_params = [{transform_indices = @transform_0, window_bounds = array<i64: 8, 16, 128>}, {pipeline_mode = #tpu.pipeline_mode<synchronous>, transform_indices = @transform_1, window_bounds = array<i64: 128, 256>}, {pipeline_mode = #tpu.pipeline_mode<synchronous>, transform_indices = @transform_2, window_bounds = array<i64: 1, 256>}, {pipeline_mode = #tpu.pipeline_mode<synchronous>, transform_indices = @transform_3, window_bounds = array<i64: 1, 256>}, {transform_indices = @transform_4, window_bounds = array<i64: 1>}, {transform_indices = @transform_5, window_bounds = array<i64: 8, 1>}]} {
    %c0 = arith.constant 0 : index
    %c0_0 = arith.constant 0 : index
    %c0_1 = arith.constant 0 : index
    %0 = vector.load %arg1[%c0, %c0_0, %c0_1] : memref<8x16x128xf32, #tpu.memory_space<vmem>>, vector<8x16x128xf32>
    %cst = arith.constant dense<0.000000e+00> : vector<8x128xf32>
    %1 = vector.multi_reduction <add>, %0, %cst [1] : vector<8x16x128xf32> to vector<8x128xf32>
    %cst_2 = arith.constant 6.250000e-02 : f32
    %2 = vector.broadcast %cst_2 : f32 to vector<8x128xf32>
    %3 = arith.mulf %1, %2 : vector<8x128xf32>
    %c0_3 = arith.constant 0 : index
    %c0_4 = arith.constant 0 : index
    %4 = vector.load %arg2[%c0_3, %c0_4] : memref<128x256xf32, #tpu.memory_space<vmem>>, vector<128x256xf32>
    %cst_5 = arith.constant dense<0.000000e+00> : vector<8x256xf32>
    %5 = tpu.matmul %3, %4, %cst_5 {dimension_numbers = #tpu.dot_dimension_numbers<[1], [0], [0], [1], [0, 0, 1, 1], [], []>} : vector<8x128xf32>, vector<128x256xf32>, vector<8x256xf32> -> vector<8x256xf32>
    %c0_6 = arith.constant 0 : index
    %c0_7 = arith.constant 0 : index
    %6 = vector.load %arg3[%c0_6, %c0_7] : memref<1x256xf32, #tpu.memory_space<vmem>>, vector<1x256xf32>
    %7 = vector.broadcast %6 : vector<1x256xf32> to vector<8x256xf32>
    %8 = arith.addf %5, %7 : vector<8x256xf32>
    %cst_8 = arith.constant 0.000000e+00 : f32
    %9 = vector.broadcast %cst_8 : f32 to vector<8x256xf32>
    %10 = arith.maximumf %8, %9 : vector<8x256xf32>
    %c0_9 = arith.constant 0 : index
    %c0_10 = arith.constant 0 : index
    %11 = vector.load %arg4[%c0_9, %c0_10] : memref<1x256xf32, #tpu.memory_space<vmem>>, vector<1x256xf32>
    %12 = vector.broadcast %11 : vector<1x256xf32> to vector<8x256xf32>
    %13 = arith.mulf %10, %12 : vector<8x256xf32>
    %cst_11 = arith.constant dense<0.000000e+00> : vector<8xf32>
    %14 = vector.multi_reduction <add>, %13, %cst_11 [1] : vector<8x256xf32> to vector<8xf32>
    %15 = vector.shape_cast %14 : vector<8xf32> to vector<8x1xf32>
    %c0_12 = arith.constant 0 : index
    %16 = memref.load %arg5[%c0_12] : memref<1xf32, #tpu.memory_space<smem>>
    %17 = vector.broadcast %16 : f32 to vector<8x1xf32>
    %18 = arith.addf %15, %17 : vector<8x1xf32>
    %19 = arith.negf %18 : vector<8x1xf32>
    %20 = math.exp %19 : vector<8x1xf32>
    %cst_13 = arith.constant 1.000000e+00 : f32
    %21 = vector.broadcast %cst_13 : f32 to vector<8x1xf32>
    %22 = arith.addf %21, %20 : vector<8x1xf32>
    %23 = arith.divf %21, %22 : vector<8x1xf32>
    %c0_14 = arith.constant 0 : index
    %c0_15 = arith.constant 0 : index
    %24 = vector.load %arg6[%c0_14, %c0_15] : memref<8x1xf32, #tpu.memory_space<vmem>>, vector<8x1xf32>
    tpu.vector_store %arg6[%c0_14, %c0_15], %23 {strides = array<i32>} : memref<8x1xf32, #tpu.memory_space<vmem>>, vector<8x1xf32>,
    return
  }
  func.func @transform_0(%arg0: i32) -> (i32, i32, i32) {
    %c0_i32 = arith.constant 0 : i32
    %c0_i32_0 = arith.constant 0 : i32
    %c0_i32_1 = arith.constant 0 : i32
    return %arg0, %c0_i32, %c0_i32_0 : i32, i32, i32
  }
  func.func @transform_1(%arg0: i32) -> (i32, i32) {
    %c0_i32 = arith.constant 0 : i32
    %c0_i32_0 = arith.constant 0 : i32
    %c0_i32_1 = arith.constant 0 : i32
    return %c0_i32, %c0_i32_0 : i32, i32
  }
  func.func @transform_2(%arg0: i32) -> (i32, i32) {
    %c0_i32 = arith.constant 0 : i32
    %c0_i32_0 = arith.constant 0 : i32
    %c0_i32_1 = arith.constant 0 : i32
    return %c0_i32, %c0_i32_0 : i32, i32
  }
  func.func @transform_3(%arg0: i32) -> (i32, i32) {
    %c0_i32 = arith.constant 0 : i32
    %c0_i32_0 = arith.constant 0 : i32
    %c0_i32_1 = arith.constant 0 : i32
    return %c0_i32, %c0_i32_0 : i32, i32
  }
  func.func @transform_4(%arg0: i32) -> i32 {
    %c0_i32 = arith.constant 0 : i32
    %c0_i32_0 = arith.constant 0 : i32
    return %c0_i32 : i32
  }
  func.func @transform_5(%arg0: i32) -> (i32, i32) {
    %c0_i32 = arith.constant 0 : i32
    %c0_i32_0 = arith.constant 0 : i32
    return %arg0, %c0_i32 : i32, i32
  }
}

</mosaic_0001>

<llo_original>
// kernel: tpu_custom_call.1
$region0: #{tpu_custom_call.1}
  #allocation0 [shape = 'u32[]', space=smem, size = 0x4, offset = 0x4, fixed_abs, tag = 'smem constant byte address 0x4 - core index']
  #allocation1 [shape = 'u32[144,128]{1,0:T(1,128)}', space=vmem, size = 0x12000, scoped, tag = 'internal scratch']
  #allocation2 [shape = 'f32[1]{0:T(128)S(6)}', space=smem, size = 0x200, scoped, tag = 'scoped memory for tpu_custom_call.1']
  %s0 = inlined_call_operand.hbm [shape: f32[8,16,128], index: 0, kind: input, shape index: {}]
  %s1 = inlined_call_operand.hbm [shape: f32[128,256], index: 1, kind: input, shape index: {}]
  %s2 = inlined_call_operand.vmem [shape: f32[1,256], index: 2, kind: input, shape index: {}]
  %s3 = inlined_call_operand.vmem [shape: f32[1,256], index: 3, kind: input, shape index: {}]
  %s4 = inlined_call_operand.<no memory space> [shape: f32[1], index: 4, kind: input, shape index: {}]
  %s5 = inlined_call_operand.vmem [shape: f32[8,1], index: 5, kind: output, shape index: {}]
  %s6 = sld [smem:[#allocation0]]
  $region38: #{tpu_custom_call.1} parent=0
    _
  %s8 = ssub.s32 1, %s6
  %s9 = scalar_select 0, %s8, %s6
  %10 = sst [smem:[#allocation2]] %s4
  $region1: #{tpu_custom_call.1} parent=0
    #allocation3 [shape = 'u8[65536]{0}', space=vmem, size = 0x10000, scoped, tag = 'input window, operand 0, single buffered']
    #allocation4 [shape = 's32[1]{0}', space=sflag, size = 0x4, scoped, tag = 'scoped memory for tpu_custom_call.1']
    #allocation5 [shape = 'u8[131072]{0}', space=vmem, size = 0x20000, scoped, tag = 'input window, operand 1, single buffered']
    #allocation6 [shape = 's32[1]{0}', space=sflag, size = 0x4, scoped, tag = 'scoped memory for tpu_custom_call.1']
    %11 = vsyncpa [#allocation4], 0
    %12 = vsyncpa [#allocation6], 0
    // Predicated region
    $region2: #{tpu_custom_call.1} parent=1 // pred_check
      _
    $region3: #{tpu_custom_call.1} parent=1 // pred_check_branch
      %14 = sbr.rel (0) target = $region5
    $region4: #{tpu_custom_call.1} parent=1 // pred_region
      %s16 = ssub.s32 2048, 2048
      %17 = vsyncadd [#allocation4], %s16
      %s18 = sshll.u32 [#allocation3], 4
      %s19 = int_to_ptr.vmem [resolvable:$true] %s18
      %24 = dma.hbm_to_vmem [thread:$0]  %s0, 2048, %s19, [#allocation4], 128, 128, 8
    $region5: #{tpu_custom_call.1} parent=1 // pred_fallthru
      _
    // Predicated region
    $region6: #{tpu_custom_call.1} parent=1 // pred_check
      _
    $region7: #{tpu_custom_call.1} parent=1 // pred_check_branch
      %26 = sbr.rel (0) target = $region9
    $region8: #{tpu_custom_call.1} parent=1 // pred_region
      %s28 = ssub.s32 4096, 4096
      %29 = vsyncadd [#allocation6], %s28
      %s30 = sshll.u32 [#allocation5], 4
      %s31 = int_to_ptr.vmem [resolvable:$true] %s30
      %36 = dma.hbm_to_vmem [thread:$0]  %s1, 4096, %s31, [#allocation6], 256, 256, 16
    $region9: #{tpu_custom_call.1} parent=1 // pred_fallthru
      _
    // Predicated region
    $region10: #{tpu_custom_call.1} parent=1 // pred_check
      _
    $region11: #{tpu_custom_call.1} parent=1 // pred_check_branch
      %38 = sbr.rel (0) target = $region13
    $region12: #{tpu_custom_call.1} parent=1 // pred_region
      _
    $region13: #{tpu_custom_call.1} parent=1 // pred_fallthru
      _
    // Predicated region
    $region14: #{tpu_custom_call.1} parent=1 // pred_check
      _
    $region15: #{tpu_custom_call.1} parent=1 // pred_check_branch
      %40 = sbr.rel (0) target = $region17
    $region16: #{tpu_custom_call.1} parent=1 // pred_region
      _
    $region17: #{tpu_custom_call.1} parent=1 // pred_fallthru
      _
    // Predicated region
    $region18: #{tpu_custom_call.1} parent=1 // pred_check
      _
    $region19: #{tpu_custom_call.1} parent=1 // pred_check_branch
      %42 = sbr.rel (0) target = $region21
    $region20: #{tpu_custom_call.1} parent=1 // pred_region
      _
    $region21: #{tpu_custom_call.1} parent=1 // pred_fallthru
      _
    // Predicated region
    $region22: #{tpu_custom_call.1} parent=1 // pred_check
      _
    $region23: #{tpu_custom_call.1} parent=1 // pred_check_branch
      %44 = sbr.rel (0) target = $region25
    $region24: #{tpu_custom_call.1} parent=1 // pred_region
      %45 = dma.done [#allocation4], 2048
    $region25: #{tpu_custom_call.1} parent=1 // pred_fallthru
      _
    // Predicated region
    $region26: #{tpu_custom_call.1} parent=1 // pred_check
      _
    $region27: #{tpu_custom_call.1} parent=1 // pred_check_branch
      %47 = sbr.rel (0) target = $region29
    $region28: #{tpu_custom_call.1} parent=1 // pred_region
      %48 = dma.done [#allocation6], 4096
    $region29: #{tpu_custom_call.1} parent=1 // pred_fallthru
      _
    %v49 = vld [vmem:[#allocation3] sm:$0xff]
    %v50 = vld [vmem:[#allocation3 + $0x8] sm:$0xff]
    %v51 = vld [vmem:[#allocation3 + $0x10] sm:$0xff]
    %v52 = vld [vmem:[#allocation3 + $0x18] sm:$0xff]
    %v53 = vld [vmem:[#allocation3 + $0x20] sm:$0xff]
    %v54 = vld [vmem:[#allocation3 + $0x28] sm:$0xff]
    %v55 = vld [vmem:[#allocation3 + $0x30] sm:$0xff]
    %v56 = vld [vmem:[#allocation3 + $0x38] sm:$0xff]
    %v57 = vld [vmem:[#allocation3 + $0x40] sm:$0xff]
    %v58 = vld [vmem:[#allocation3 + $0x48] sm:$0xff]
    %v59 = vld [vmem:[#allocation3 + $0x50] sm:$0xff]
    %v60 = vld [vmem:[#allocation3 + $0x58] sm:$0xff]
    %v61 = vld [vmem:[#allocation3 + $0x60] sm:$0xff]
    %v62 = vld [vmem:[#allocation3 + $0x68] sm:$0xff]
    %v63 = vld [vmem:[#allocation3 + $0x70] sm:$0xff]
    %v64 = vld [vmem:[#allocation3 + $0x78] sm:$0xff]
    %v65 = vadd.f32 %v49, %v50
    %v66 = vrot.slane %v65, 4
    %v67 = vadd.f32 %v65, %v66
    %v68 = vrot.slane %v67, 2
    %v69 = vadd.f32 %v67, %v68
    %v70 = vrot.slane %v69, 1
    %v71 = vadd.f32 %v69, %v70
    %v72 = vadd.f32 %v51, %v52
    %v73 = vrot.slane %v72, 4
    %v74 = vadd.f32 %v72, %v73
    %v75 = vrot.slane %v74, 2
    %v76 = vadd.f32 %v74, %v75
    %v77 = vrot.slane %v76, 1
    %v78 = vadd.f32 %v76, %v77
    %v79 = vadd.f32 %v53, %v54
    %v80 = vrot.slane %v79, 4
    %v81 = vadd.f32 %v79, %v80
    %v82 = vrot.slane %v81, 2
    %v83 = vadd.f32 %v81, %v82
    %v84 = vrot.slane %v83, 1
    %v85 = vadd.f32 %v83, %v84
    %v86 = vadd.f32 %v55, %v56
    %v87 = vrot.slane %v86, 4
    %v88 = vadd.f32 %v86, %v87
    %v89 = vrot.slane %v88, 2
    %v90 = vadd.f32 %v88, %v89
    %v91 = vrot.slane %v90, 1
    %v92 = vadd.f32 %v90, %v91
    %v93 = vadd.f32 %v57, %v58
    %v94 = vrot.slane %v93, 4
    %v95 = vadd.f32 %v93, %v94
    %v96 = vrot.slane %v95, 2
    %v97 = vadd.f32 %v95, %v96
    %v98 = vrot.slane %v97, 1
    %v99 = vadd.f32 %v97, %v98
    %v100 = vadd.f32 %v59, %v60
    %v101 = vrot.slane %v100, 4
    %v102 = vadd.f32 %v100, %v101
    %v103 = vrot.slane %v102, 2
    %v104 = vadd.f32 %v102, %v103
    %v105 = vrot.slane %v104, 1
    %v106 = vadd.f32 %v104, %v105
    %v107 = vadd.f32 %v61, %v62
    %v108 = vrot.slane %v107, 4
    %v109 = vadd.f32 %v107, %v108
    %v110 = vrot.slane %v109, 2
    %v111 = vadd.f32 %v109, %v110
    %v112 = vrot.slane %v111, 1
    %v113 = vadd.f32 %v111, %v112
    %v114 = vadd.f32 %v63, %v64
    %v115 = vrot.slane %v114, 4
    %v116 = vadd.f32 %v114, %v115
    %v117 = vrot.slane %v116, 2
    %v118 = vadd.f32 %v116, %v117
    %v119 = vrot.slane %v118, 1
    %v120 = vadd.f32 %v118, %v119
    %v121 = vmul.f32 %v71, 0.0625
    %v122 = vmul.f32 %v78, 0.0625
    %v123 = vmul.f32 %v85, 0.0625
    %v124 = vmul.f32 %v92, 0.0625
    %v125 = vmul.f32 %v99, 0.0625
    %v126 = vmul.f32 %v106, 0.0625
    %v127 = vmul.f32 %v113, 0.0625
    %v128 = vmul.f32 %v120, 0.0625
    %v129 = vld [vmem:[#allocation5] sm:$0xff]
    %v130 = vld [vmem:[#allocation5 + $0x8] sm:$0xff]
    %v131 = vld [vmem:[#allocation5 + $0x10] sm:$0xff]
    %v132 = vld [vmem:[#allocation5 + $0x18] sm:$0xff]
    %v133 = vld [vmem:[#allocation5 + $0x20] sm:$0xff]
    %v134 = vld [vmem:[#allocation5 + $0x28] sm:$0xff]
    %v135 = vld [vmem:[#allocation5 + $0x30] sm:$0xff]
    %v136 = vld [vmem:[#allocation5 + $0x38] sm:$0xff]
    %v137 = vld [vmem:[#allocation5 + $0x40] sm:$0xff]
    %v138 = vld [vmem:[#allocation5 + $0x48] sm:$0xff]
    %v139 = vld [vmem:[#allocation5 + $0x50] sm:$0xff]
    %v140 = vld [vmem:[#allocation5 + $0x58] sm:$0xff]
    %v141 = vld [vmem:[#allocation5 + $0x60] sm:$0xff]
    %v142 = vld [vmem:[#allocation5 + $0x68] sm:$0xff]
    %v143 = vld [vmem:[#allocation5 + $0x70] sm:$0xff]
    %v144 = vld [vmem:[#allocation5 + $0x78] sm:$0xff]
    %v145 = vld [vmem:[#allocation5 + $0x80] sm:$0xff]
    %v146 = vld [vmem:[#allocation5 + $0x88] sm:$0xff]
    %v147 = vld [vmem:[#allocation5 + $0x90] sm:$0xff]
    %v148 = vld [vmem:[#allocation5 + $0x98] sm:$0xff]
    %v149 = vld [vmem:[#allocation5 + $0xa0] sm:$0xff]
    %v150 = vld [vmem:[#allocation5 + $0xa8] sm:$0xff]
    %v151 = vld [vmem:[#allocation5 + $0xb0] sm:$0xff]
    %v152 = vld [vmem:[#allocation5 + $0xb8] sm:$0xff]
    %v153 = vld [vmem:[#allocation5 + $0xc0] sm:$0xff]
    %v154 = vld [vmem:[#allocation5 + $0xc8] sm:$0xff]
    %v155 = vld [vmem:[#allocation5 + $0xd0] sm:$0xff]
    %v156 = vld [vmem:[#allocation5 + $0xd8] sm:$0xff]
    %v157 = vld [vmem:[#allocation5 + $0xe0] sm:$0xff]
    %v158 = vld [vmem:[#allocation5 + $0xe8] sm:$0xff]
    %v159 = vld [vmem:[#allocation5 + $0xf0] sm:$0xff]
    %v160 = vld [vmem:[#allocation5 + $0xf8] sm:$0xff]
    %v161 = vld [vmem:[%s2] sm:$0x3]
    %v163 = vlaneseq
    %v164 = vshrl.u32 %v163, 7
    %v165 = vsub.s32 0, %v164
    %v166 = vrot.slane %v161, %v165
    %v167 = vlaneseq
    %v168 = vshrl.u32 %v167, 7
    %v169 = vsub.s32 1, %v168
    %v170 = vrot.slane %v161, %v169
    %vm181 = vcmask 1041409
    %v182 = vsel %vm181, %v122, %v121
    %vm183 = vcmask 1042434
    %v184 = vsel %vm183, %v123, %v182
    %vm185 = vcmask 1043459
    %v186 = vsel %vm185, %v124, %v184
    %vm187 = vcmask 1044484
    %v188 = vsel %vm187, %v125, %v186
    %vm189 = vcmask 1045509
    %v190 = vsel %vm189, %v126, %v188
    %vm191 = vcmask 1046534
    %v192 = vsel %vm191, %v127, %v190
    %vm193 = vcmask 1047559
    %v194 = vsel %vm193, %v128, %v192
    %196 = vmatprep.subr.mxu0 %v130
    %197 = vmatpush1.msra.mxu0 %v129
    %198 = vmatprep.subr.mxu0 %v132
    %199 = vmatpush1.msra.mxu0 %v131
    %200 = vmatprep.subr.mxu0 %v134
    %201 = vmatpush1.msra.mxu0 %v133
    %202 = vmatprep.subr.mxu0 %v136
    %203 = vmatpush1.msra.mxu0 %v135
    %204 = vmatprep.subr.mxu0 %v138
    %205 = vmatpush1.msra.mxu0 %v137
    %206 = vmatprep.subr.mxu0 %v140
    %207 = vmatpush1.msra.mxu0 %v139
    %208 = vmatprep.subr.mxu0 %v142
    %209 = vmatpush1.msra.mxu0 %v141
    %210 = vmatprep.subr.mxu0 %v144
    %211 = vmatpush1.msra.mxu0 %v143
    %212 = vmatprep.subr.mxu0 %v146
    %213 = vmatpush1.msra.mxu0 %v145
    %214 = vmatprep.subr.mxu0 %v148
    %215 = vmatpush1.msra.mxu0 %v147
    %216 = vmatprep.subr.mxu0 %v150
    %217 = vmatpush1.msra.mxu0 %v149
    %218 = vmatprep.subr.mxu0 %v152
    %219 = vmatpush1.msra.mxu0 %v151
    %220 = vmatprep.subr.mxu0 %v154
    %221 = vmatpush1.msra.mxu0 %v153
    %222 = vmatprep.subr.mxu0 %v156
    %223 = vmatpush1.msra.mxu0 %v155
    %224 = vmatprep.subr.mxu0 %v158
    %225 = vmatpush1.msra.mxu0 %v157
    %226 = vmatprep.subr.mxu0 %v160
    %227 = vmatpush1.msra.mxu0 %v159
    %228 = vmatprep.subr.mxu0 0.0
    %229 = vmatpush1.msra.mxu0 0.0
    %230 = vmatprep.subr.mxu0 0.0
    %231 = vmatpush1.msra.mxu0 0.0
    %232 = vmatprep.subr.mxu0 0.0
    %233 = vmatpush1.msra.mxu0 0.0
    %234 = vmatprep.subr.mxu0 0.0
    %235 = vmatpush1.msra.mxu0 0.0
    %236 = vmatprep.subr.mxu0 0.0
    %237 = vmatpush1.msra.mxu0 0.0
    %238 = vmatprep.subr.mxu0 0.0
    %239 = vmatpush1.msra.mxu0 0.0
    %240 = vmatprep.subr.mxu0 0.0
    %241 = vmatpush1.msra.mxu0 0.0
    %242 = vmatprep.subr.mxu0 0.0
    %243 = vmatpush1.msra.mxu0 0.0
    %244 = vmatprep.subr.mxu0 0.0
    %245 = vmatpush1.msra.mxu0 0.0
    %246 = vmatprep.subr.mxu0 0.0
    %247 = vmatpush1.msra.mxu0 0.0
    %248 = vmatprep.subr.mxu0 0.0
    %249 = vmatpush1.msra.mxu0 0.0
    %250 = vmatprep.subr.mxu0 0.0
    %251 = vmatpush1.msra.mxu0 0.0
    %252 = vmatprep.subr.mxu0 0.0
    %253 = vmatpush1.msra.mxu0 0.0
    %254 = vmatprep.subr.mxu0 0.0
    %255 = vmatpush1.msra.mxu0 0.0
    %256 = vmatprep.subr.mxu0 0.0
    %257 = vmatpush1.msra.mxu0 0.0
    %258 = vmatprep.subr.mxu0 0.0
    %259 = vmatpush1.msra.mxu0 0.0
    %260 = vmatprep.mubr.f32.mxu0 0.0
    %261 = vmatmul.mubr.f32.gmra.mrb[0].mxu0 %v194
    %v262 = vpop.f32.mrb[0].mxu0
    %v263 = vadd.f32 %v166, %v262
    %v264 = vpop.f32.mrb[0].mxu0
    %v265 = vadd.f32 %v170, %v264
    %266 = vdwg.mxu0
    %v267 = vmax.f32 %v263, 0.0
    %v268 = vmax.f32 %v265, 0.0
    %v269 = vld [vmem:[%s3] sm:$0x3]
    %v271 = vlaneseq
    %v272 = vshrl.u32 %v271, 7
    %v273 = vsub.s32 0, %v272
    %v274 = vrot.slane %v269, %v273
    %v275 = vlaneseq
    %v276 = vshrl.u32 %v275, 7
    %v277 = vsub.s32 1, %v276
    %v278 = vrot.slane %v269, %v277
    %v281 = vmul.f32 %v267, %v274
    %v282 = vmul.f32 %v268, %v278
    %v283 = vadd.f32 %v281, %v282
    %284 = vadd.xlane.f32.xlu0 %v283
    %v285 = vpop.xlane.xlu0 %284
    %s286 = sld [smem:[#allocation2]]
    %v287 = vstv %s286
    %v288 = vadd.f32 %v285, %v287
    %v289 = vxor.u32 %v288, 2147483648
    %v290 = vmul.f32 %v289, 1.442695
    %v291 = vpow.pop %v290
    %v292 = vadd.f32 %v291, 1.0
    %v293 = vrcp.pop %v292
    %v294 = vmul.f32 1.0, %v293
    %vm295 = vcmask 7168
    %296 = vst.msk [vmem:[%s5] sm:$0xff] %vm295, %v294
    // Predicated region
    $region30: #{tpu_custom_call.1} parent=1 // pred_check
      _
    $region31: #{tpu_custom_call.1} parent=1 // pred_check_branch
      %298 = sbr.rel (0) target = $region33
    $region32: #{tpu_custom_call.1} parent=1 // pred_region
      _
    $region33: #{tpu_custom_call.1} parent=1 // pred_fallthru
      _
    // Predicated region
    $region34: #{tpu_custom_call.1} parent=1 // pred_check
      _
    $region35: #{tpu_custom_call.1} parent=1 // pred_check_branch
      %300 = sbr.rel (0) target = $region37
    $region36: #{tpu_custom_call.1} parent=1 // pred_region
      _
    $region37: #{tpu_custom_call.1} parent=1 // pred_fallthru
      _
    %301 = vsyncpa [#allocation4], 1
    %302 = vsyncpa [#allocation6], 1

</llo_original>
